<compile_context>
chip_gen: v6e
topology: v6e:2x2x1
jax: 0.10.0
libtpu: 0.0.40
codegen_flags: <defaults>
</compile_context>

<pallas_src>
from typing import NamedTuple

import jax
import jax.numpy as jnp
from jax.experimental import pallas as pl
from jax.experimental.pallas import tpu as pltpu

LOG_STD_MIN = -5.0
LOG_STD_MAX = 2.0
_C1 = 0.5 * (LOG_STD_MAX - LOG_STD_MIN)
_C0 = LOG_STD_MIN + _C1

HIDDEN_DIM = 32   # small stand-in for 1280
ACT_DIM = 18      # as in the module

_LANE = 128
_SUBLANE = 8
_MAX_TILE_ROWS = 1024   # 1024*128*4B = 512 KiB per stream per buffer


class SquashedNormalOut(NamedTuple):
    loc: jax.Array    # base Normal mean (= input mu, no kernel copy needed)
    std: jax.Array    # base Normal std
    mean: jax.Array   # tanh-squashed mean of the distribution


def _actor_kernel(mu_ref, std_ref, mean_ref):
    x = mu_ref[...].astype(jnp.float32)
    t = jnp.tanh(x)
    mean_ref[...] = t.astype(mean_ref.dtype)
    std_ref[...] = jnp.exp(t * _C1 + _C0).astype(std_ref.dtype)


def diag_gaussian_actor_forward(mu: jax.Array) -> SquashedNormalOut:
    """mu: any-shape float array. Returns (loc=mu, std, squashed mean)."""
    orig_shape = mu.shape
    n = mu.size

    # Flatten to a lane-dense 2-D slab [rows, 128], rows padded to 8.
    rows = pl.cdiv(n, _LANE)
    if rows <= _MAX_TILE_ROWS:
        padded_rows = pl.cdiv(rows, _SUBLANE) * _SUBLANE
        tile_rows = padded_rows          # single full-extent block
    else:
        tile_rows = _MAX_TILE_ROWS       # multiple of 8 -> (8,128) tiling ok
        padded_rows = pl.cdiv(rows, tile_rows) * tile_rows
    padded_n = padded_rows * _LANE

    flat = jnp.ravel(mu)
    if padded_n != n:
        flat = jnp.pad(flat, (0, padded_n - n))
    slab = flat.reshape(padded_rows, _LANE)

    grid = (padded_rows // tile_rows,)
    block = pl.BlockSpec((tile_rows, _LANE), lambda i: (i, 0))
    out_sds = jax.ShapeDtypeStruct((padded_rows, _LANE), mu.dtype)

    std_slab, mean_slab = pl.pallas_call(
        _actor_kernel,
        out_shape=(out_sds, out_sds),
        grid=grid,
        in_specs=[block],
        out_specs=(block, block),
        compiler_params=pltpu.CompilerParams(
            dimension_semantics=("parallel",),
            # 3 streams (1 in + 2 out), double-buffered, <= ~3 MiB worst case;
            # explicit cap keeps the kernel portable across v5e/v6e/v7x.
            vmem_limit_bytes=32 * 1024 * 1024,
        ),
    )(slab)

    std = std_slab.reshape(-1)[:n].reshape(orig_shape)
    mean = mean_slab.reshape(-1)[:n].reshape(orig_shape)
    # loc is the input itself; no kernel copy needed.
    return SquashedNormalOut(loc=mu, std=std, mean=mean)


def _init_linear_params(key, in_dim, out_dim):
    """Deterministic orthogonal weight + zero bias (mirrors weight_init)."""
    w = jax.nn.initializers.orthogonal()(key, (out_dim, in_dim), jnp.float32)
    b = jnp.zeros((out_dim,), dtype=jnp.float32)
    return w, b


if __name__ == "__main__":
    key = jax.random.PRNGKey(0)
    k_mu, k_w1, k_w2 = jax.random.split(key, 3)

    # Module parameters (unused by forward(), built to mirror __init__).
    mu_w, mu_b = _init_linear_params(k_w1, HIDDEN_DIM, ACT_DIM)
    log_std_w, log_std_b = _init_linear_params(k_w2, HIDDEN_DIM, ACT_DIM)
    # TODO(synk): forward() never applies self.mu / self.log_std Linear layers,
    # so these parameters are constructed but intentionally not used.

    # Small example input: batch=2, seq=8, feature=HIDDEN_DIM.
    mu_in = jax.random.normal(k_mu, (2, 8, HIDDEN_DIM), dtype=jnp.float32)

    out = diag_gaussian_actor_forward(mu_in)
    jax.block_until_ready(out)

    # Reference check in plain JAX.
    t = jnp.tanh(mu_in)
    ref_std = jnp.exp(LOG_STD_MIN + 0.5 * (LOG_STD_MAX - LOG_STD_MIN) * (t + 1.0))
    assert jnp.allclose(out.loc, mu_in, atol=1e-6)
    assert jnp.allclose(out.std, ref_std, rtol=1e-5, atol=1e-6)
    assert jnp.allclose(out.mean, t, rtol=1e-5, atol=1e-6)

    print("KERNEL_OK")
</pallas_src>

<mosaic_0001>
module attributes {stable_mosaic.version = 11 : i64} {
  func.func @_actor_kernel(%arg0: i32, %arg1: memref<8x128xf32, #tpu.memory_space<vmem>>, %arg2: memref<8x128xf32, #tpu.memory_space<vmem>>, %arg3: memref<8x128xf32, #tpu.memory_space<vmem>>) attributes {dimension_semantics = [#tpu.dimension_semantics<parallel>], iteration_bounds = array<i64: 1>, scalar_prefetch = 0 : i64, scratch_operands = 0 : i64, tpu.core_type = #tpu.core_type<tc>, window_params = [{transform_indices = @transform_0, window_bounds = array<i64: 8, 128>}, {transform_indices = @transform_1, window_bounds = array<i64: 8, 128>}, {transform_indices = @transform_2, window_bounds = array<i64: 8, 128>}]} {
    %c0 = arith.constant 0 : index
    %c0_0 = arith.constant 0 : index
    %0 = vector.load %arg1[%c0, %c0_0] : memref<8x128xf32, #tpu.memory_space<vmem>>, vector<8x128xf32>
    %1 = math.tanh %0 : vector<8x128xf32>
    %c0_1 = arith.constant 0 : index
    %c0_2 = arith.constant 0 : index
    %2 = vector.load %arg3[%c0_1, %c0_2] : memref<8x128xf32, #tpu.memory_space<vmem>>, vector<8x128xf32>
    tpu.vector_store %arg3[%c0_1, %c0_2], %1 {strides = array<i32>} : memref<8x128xf32, #tpu.memory_space<vmem>>, vector<8x128xf32>,
    %cst = arith.constant 3.500000e+00 : f32
    %3 = vector.broadcast %cst : f32 to vector<8x128xf32>
    %4 = arith.mulf %1, %3 : vector<8x128xf32>
    %cst_3 = arith.constant -1.500000e+00 : f32
    %5 = vector.broadcast %cst_3 : f32 to vector<8x128xf32>
    %6 = arith.addf %4, %5 : vector<8x128xf32>
    %7 = math.exp %6 : vector<8x128xf32>
    %c0_4 = arith.constant 0 : index
    %c0_5 = arith.constant 0 : index
    %8 = vector.load %arg2[%c0_4, %c0_5] : memref<8x128xf32, #tpu.memory_space<vmem>>, vector<8x128xf32>
    tpu.vector_store %arg2[%c0_4, %c0_5], %7 {strides = array<i32>} : memref<8x128xf32, #tpu.memory_space<vmem>>, vector<8x128xf32>,
    return
  }
  func.func @transform_0(%arg0: i32) -> (i32, i32) {
    %c0_i32 = arith.constant 0 : i32
    %c0_i32_0 = arith.constant 0 : i32
    return %arg0, %c0_i32 : i32, i32
  }
  func.func @transform_1(%arg0: i32) -> (i32, i32) {
    %c0_i32 = arith.constant 0 : i32
    %c0_i32_0 = arith.constant 0 : i32
    return %arg0, %c0_i32 : i32, i32
  }
  func.func @transform_2(%arg0: i32) -> (i32, i32) {
    %c0_i32 = arith.constant 0 : i32
    %c0_i32_0 = arith.constant 0 : i32
    return %arg0, %c0_i32 : i32, i32
  }
}

</mosaic_0001>

<llo_original>
// kernel: tpu_custom_call.1
$region0: #{tpu_custom_call.1}
  #allocation0 [shape = 'u32[]', space=smem, size = 0x4, offset = 0x4, fixed_abs, tag = 'smem constant byte address 0x4 - core index']
  #allocation1 [shape = 'u32[144,128]{1,0:T(1,128)}', space=vmem, size = 0x12000, scoped, tag = 'internal scratch']
  %s0 = inlined_call_operand.hbm [shape: f32[8,128], index: 0, kind: input, shape index: {}]
  %s1 = inlined_call_operand.hbm [shape: f32[8,128], index: 1, kind: output, shape index: {0}]
  %s2 = inlined_call_operand.hbm [shape: f32[8,128], index: 2, kind: output, shape index: {1}]
  %3 = xla_tuple %s1, %s2
  %s4 = sld [smem:[#allocation0]]
  $region26: #{tpu_custom_call.1} parent=0
    _
  %s6 = ssub.s32 1, %s4
  %s7 = scalar_select 0, %s6, %s4
  $region1: #{tpu_custom_call.1} parent=0
    #allocation2 [shape = 'u8[4096]{0}', space=vmem, size = 0x1000, scoped, tag = 'input window, operand 0, single buffered']
    #allocation3 [shape = 's32[1]{0}', space=sflag, size = 0x4, scoped, tag = 'scoped memory for tpu_custom_call.1']
    #allocation4 [shape = 's32[1]{0}', space=sflag, size = 0x4, scoped, tag = 'scoped memory for tpu_custom_call.1']
    #allocation5 [shape = 'u8[4096]{0}', space=vmem, size = 0x1000, scoped, tag = 'output window, operand 0, single buffered']
    #allocation6 [shape = 'u8[4096]{0}', space=vmem, size = 0x1000, scoped, tag = 'output window, operand 1, single buffered']
    #allocation7 [shape = 's32[1]{0}', space=sflag, size = 0x4, scoped, tag = 'scoped memory for tpu_custom_call.1']
    %8 = vsyncpa [#allocation3], 0
    %9 = vsyncpa [#allocation4], 0
    %10 = vsyncpa [#allocation7], 0
    // Predicated region
    $region2: #{tpu_custom_call.1} parent=1 // pred_check
      _
    $region3: #{tpu_custom_call.1} parent=1 // pred_check_branch
      %12 = sbr.rel (0) target = $region5
    $region4: #{tpu_custom_call.1} parent=1 // pred_region
      %s14 = ssub.s32 128, 128
      %15 = vsyncadd [#allocation3], %s14
      %s17 = sshll.u32 [#allocation2], 4
      %s18 = int_to_ptr.vmem [resolvable:$true] %s17
      %20 = dma.hbm_to_vmem [thread:$0]  %s0, 128, %s18, [#allocation3]
    $region5: #{tpu_custom_call.1} parent=1 // pred_fallthru
      _
    // Predicated region
    $region6: #{tpu_custom_call.1} parent=1 // pred_check
      _
    $region7: #{tpu_custom_call.1} parent=1 // pred_check_branch
      %22 = sbr.rel (0) target = $region9
    $region8: #{tpu_custom_call.1} parent=1 // pred_region
      %23 = dma.done [#allocation3], 128
    $region9: #{tpu_custom_call.1} parent=1 // pred_fallthru
      _
    %v24 = vld [vmem:[#allocation2] sm:$0xff]
    %v25 = vtanh.pop %v24
    %26 = vst [vmem:[#allocation6] sm:$0xff] %v25
    %v27 = vmul.f32 %v25, 3.5
    %v28 = vadd.f32 %v27, -1.5
    %v29 = vmul.f32 %v28, 1.442695
    %v30 = vpow.pop %v29
    %31 = vst [vmem:[#allocation5] sm:$0xff] %v30
    // Predicated region
    $region10: #{tpu_custom_call.1} parent=1 // pred_check
      _
    $region11: #{tpu_custom_call.1} parent=1 // pred_check_branch
      %33 = sbr.rel (0) target = $region13
    $region12: #{tpu_custom_call.1} parent=1 // pred_region
      %s35 = ssub.s32 128, 128
      %36 = vsyncadd [#allocation4], %s35
      %s38 = sshll.u32 [#allocation5], 4
      %s39 = int_to_ptr.vmem [resolvable:$true] %s38
      %41 = dma.vmem_to_hbm [thread:$0]  %s39, 128, %s1, [#allocation4]
    $region13: #{tpu_custom_call.1} parent=1 // pred_fallthru
      _
    // Predicated region
    $region14: #{tpu_custom_call.1} parent=1 // pred_check
      _
    $region15: #{tpu_custom_call.1} parent=1 // pred_check_branch
      %43 = sbr.rel (0) target = $region17
    $region16: #{tpu_custom_call.1} parent=1 // pred_region
      %s45 = ssub.s32 128, 128
      %46 = vsyncadd [#allocation7], %s45
      %s48 = sshll.u32 [#allocation6], 4
      %s49 = int_to_ptr.vmem [resolvable:$true] %s48
      %51 = dma.vmem_to_hbm [thread:$0]  %s49, 128, %s2, [#allocation7]
    $region17: #{tpu_custom_call.1} parent=1 // pred_fallthru
      _
    // Predicated region
    $region18: #{tpu_custom_call.1} parent=1 // pred_check
      _
    $region19: #{tpu_custom_call.1} parent=1 // pred_check_branch
      %53 = sbr.rel (0) target = $region21
    $region20: #{tpu_custom_call.1} parent=1 // pred_region
      %54 = dma.done [#allocation4], 128
    $region21: #{tpu_custom_call.1} parent=1 // pred_fallthru
      _
    // Predicated region
    $region22: #{tpu_custom_call.1} parent=1 // pred_check
      _
    $region23: #{tpu_custom_call.1} parent=1 // pred_check_branch
      %56 = sbr.rel (0) target = $region25
    $region24: #{tpu_custom_call.1} parent=1 // pred_region
      %57 = dma.done [#allocation7], 128
    $region25: #{tpu_custom_call.1} parent=1 // pred_fallthru
      _
    %58 = vsyncpa [#allocation3], 1
    %59 = vsyncpa [#allocation4], 1
    %60 = vsyncpa [#allocation7], 1

</llo_original>
